<compile_context>
chip_gen: v5e
topology: v5e:2x2
jax: 0.10.0
libtpu: 0.0.40
codegen_flags: <defaults>
</compile_context>

<pallas_src>
import functools

import jax
import jax.numpy as jnp
from jax import lax
from jax.experimental import pallas as pl
from jax.experimental.pallas import tpu as pltpu

_LANE = 128


def _huber_partial_kernel(pred_ref, gt_ref, out_ref, *, rows, block_rows):
    """One grid step: masked smooth-L1 (beta=1) over a (block_rows, 128) tile,
    reduced over the sublane axis into a (1, 128) per-lane partial sum."""
    i = pl.program_id(0)

    p = pred_ref[...].astype(jnp.float32)
    g = gt_ref[...].astype(jnp.float32)

    # Row-validity mask for the (possibly partial) last block: out-of-range rows hold
    # unspecified data, so mask by logical row index (no HBM padding copy needed).
    row = lax.broadcasted_iota(jnp.int32, p.shape, 0) + i * block_rows
    mask = (row < rows) & (g > 0.0)          # fused (gt > 0) mask + tail mask

    d = jnp.where(mask, p - g, 0.0)          # == pred*mask - gt*mask (NaN-robust)
    ad = jnp.abs(d)
    # smooth_l1 with beta=1: 0.5*d^2 if |d| < 1 else |d| - 0.5
    loss = jnp.where(ad < 1.0, 0.5 * d * d, ad - 0.5)

    out_ref[...] = jnp.sum(loss, axis=0, keepdims=True)   # (1, 128) partial sums


def huber_delta1_loss(prediction, gt, input=None, *, block_rows=1024):
    """Pallas equivalent of Huber_delta1_loss.forward(prediction, gt, input).

    `input` is accepted for signature parity but (as in the PyTorch module) unused.
    Returns a scalar float32 (mean over ALL elements, masked loss where gt <= 0 is 0).
    """
    del input
    total = prediction.size
    assert gt.size == total, "prediction and gt must have the same number of elements"

    # Keep the native dtype on the wire; the kernel upcasts to f32 for the math.
    p = prediction.reshape(-1)
    g = gt.reshape(-1)

    rem = total % _LANE
    if rem:
        # Rare path: only when the element count is not lane-aligned. Padded gt
        # elements are exactly 0 -> excluded by the (gt > 0) mask.
        tail = _LANE - rem
        p = jnp.pad(p, (0, tail))
        g = jnp.pad(g, (0, tail))

    rows = p.size // _LANE
    p = p.reshape(rows, _LANE)
    g = g.reshape(rows, _LANE)

    block_rows = min(block_rows, rows)          # small inputs -> single full block
    num_blocks = pl.cdiv(rows, block_rows)      # last block masked in-kernel

    partials = pl.pallas_call(
        functools.partial(_huber_partial_kernel, rows=rows, block_rows=block_rows),
        out_shape=jax.ShapeDtypeStruct((num_blocks, _LANE), jnp.float32),
        grid=(num_blocks,),
        in_specs=[
            pl.BlockSpec((block_rows, _LANE), lambda i: (i, 0)),
            pl.BlockSpec((block_rows, _LANE), lambda i: (i, 0)),
        ],
        out_specs=pl.BlockSpec((1, _LANE), lambda i: (i, 0)),
        compiler_params=pltpu.CompilerParams(
            # Grid steps are independent -> megacore sharding on v7x (2 TCs).
            dimension_semantics=("parallel",),
        ),
    )(p, g)

    # Tiny final reduction (num_blocks x 128 f32) + mean over the ORIGINAL count.
    return jnp.sum(partials) / jnp.float32(total)


def _reference(prediction, gt):
    mask = (gt > 0).astype(jnp.float32)
    d = prediction.astype(jnp.float32) * mask - gt.astype(jnp.float32) * mask
    ad = jnp.abs(d)
    loss = jnp.where(ad < 1.0, 0.5 * d * d, ad - 0.5)
    return jnp.mean(loss)


if __name__ == "__main__":
    key = jax.random.PRNGKey(0)
    k1, k2, k3 = jax.random.split(key, 3)

    N, C, H, W = 2, 4, 16, 16
    prediction = jax.random.normal(k1, (N, C, H, W), dtype=jnp.float32) * 2.0
    # gt: mix of positives and non-positives so the mask is non-trivial
    gt = jax.random.normal(k2, (N, C, H, W), dtype=jnp.float32) * 2.0
    inp = jax.random.normal(k3, (N, C, H, W), dtype=jnp.float32)

    out = jax.block_until_ready(huber_delta1_loss(prediction, gt, inp))

    ref = _reference(prediction, gt)
    assert jnp.allclose(out, ref, atol=1e-5, rtol=1e-5), (out, ref)
    print("KERNEL_OK")
</pallas_src>

<mosaic_0001>
module attributes {stable_mosaic.version = 11 : i64} {
  func.func @_huber_partial_kernel(%arg0: i32, %arg1: memref<16x128xf32, #tpu.memory_space<vmem>>, %arg2: memref<16x128xf32, #tpu.memory_space<vmem>>, %arg3: memref<1x128xf32, #tpu.memory_space<vmem>>) attributes {dimension_semantics = [#tpu.dimension_semantics<parallel>], iteration_bounds = array<i64: 1>, scalar_prefetch = 0 : i64, scratch_operands = 0 : i64, tpu.core_type = #tpu.core_type<tc>, window_params = [{transform_indices = @transform_0, window_bounds = array<i64: 16, 128>}, {transform_indices = @transform_1, window_bounds = array<i64: 16, 128>}, {transform_indices = @transform_2, window_bounds = array<i64: 1, 128>}]} {
    %c0 = arith.constant 0 : index
    %c0_0 = arith.constant 0 : index
    %0 = vector.load %arg1[%c0, %c0_0] : memref<16x128xf32, #tpu.memory_space<vmem>>, vector<16x128xf32>
    %c0_1 = arith.constant 0 : index
    %c0_2 = arith.constant 0 : index
    %1 = vector.load %arg2[%c0_1, %c0_2] : memref<16x128xf32, #tpu.memory_space<vmem>>, vector<16x128xf32>
    %2 = tpu.iota {dimensions = array<i32: 0>} : vector<16x128xi32>
    %c16_i32 = arith.constant 16 : i32
    %3 = arith.muli %arg0, %c16_i32 : i32
    %4 = vector.broadcast %3 : i32 to vector<16x128xi32>
    %5 = arith.addi %2, %4 : vector<16x128xi32>
    %c16_i32_3 = arith.constant 16 : i32
    %6 = vector.broadcast %c16_i32_3 : i32 to vector<16x128xi32>
    %7 = arith.cmpi slt, %5, %6 : vector<16x128xi32>
    %cst = arith.constant 0.000000e+00 : f32
    %8 = vector.broadcast %cst : f32 to vector<16x128xf32>
    %9 = arith.cmpf ogt, %1, %8 : vector<16x128xf32>
    %10 = arith.andi %7, %9 : vector<16x128xi1>
    %11 = arith.subf %0, %1 : vector<16x128xf32>
    %cst_4 = arith.constant 0.000000e+00 : f32
    %12 = vector.broadcast %cst_4 : f32 to vector<16x128xf32>
    %13 = arith.select %10, %11, %12 : vector<16x128xi1>, vector<16x128xf32>
    %14 = math.absf %13 : vector<16x128xf32>
    %cst_5 = arith.constant 1.000000e+00 : f32
    %15 = vector.broadcast %cst_5 : f32 to vector<16x128xf32>
    %16 = arith.cmpf olt, %14, %15 : vector<16x128xf32>
    %cst_6 = arith.constant 5.000000e-01 : f32
    %17 = vector.broadcast %cst_6 : f32 to vector<16x128xf32>
    %18 = arith.mulf %17, %13 : vector<16x128xf32>
    %19 = arith.mulf %18, %13 : vector<16x128xf32>
    %cst_7 = arith.constant 5.000000e-01 : f32
    %20 = vector.broadcast %cst_7 : f32 to vector<16x128xf32>
    %21 = arith.subf %14, %20 : vector<16x128xf32>
    %22 = arith.select %16, %19, %21 : vector<16x128xi1>, vector<16x128xf32>
    %cst_8 = arith.constant dense<0.000000e+00> : vector<128xf32>
    %23 = vector.multi_reduction <add>, %22, %cst_8 [0] : vector<16x128xf32> to vector<128xf32>
    %24 = vector.shape_cast %23 : vector<128xf32> to vector<1x128xf32>
    %c0_9 = arith.constant 0 : index
    %c0_10 = arith.constant 0 : index
    %25 = vector.load %arg3[%c0_9, %c0_10] : memref<1x128xf32, #tpu.memory_space<vmem>>, vector<1x128xf32>
    tpu.vector_store %arg3[%c0_9, %c0_10], %24 {strides = array<i32>} : memref<1x128xf32, #tpu.memory_space<vmem>>, vector<1x128xf32>,
    return
  }
  func.func @transform_0(%arg0: i32) -> (i32, i32) {
    %c0_i32 = arith.constant 0 : i32
    %c0_i32_0 = arith.constant 0 : i32
    return %arg0, %c0_i32 : i32, i32
  }
  func.func @transform_1(%arg0: i32) -> (i32, i32) {
    %c0_i32 = arith.constant 0 : i32
    %c0_i32_0 = arith.constant 0 : i32
    return %arg0, %c0_i32 : i32, i32
  }
  func.func @transform_2(%arg0: i32) -> (i32, i32) {
    %c0_i32 = arith.constant 0 : i32
    %c0_i32_0 = arith.constant 0 : i32
    return %arg0, %c0_i32 : i32, i32
  }
}

</mosaic_0001>

<llo_original>
// kernel: tpu_custom_call.1
$region0: #{tpu_custom_call.1}
  #allocation0 [shape = 'u32[]', space=smem, size = 0x4, offset = 0x4, fixed_abs, tag = 'smem constant byte address 0x4 - core index']
  #allocation1 [shape = 'u32[72,128]{1,0:T(1,128)}', space=vmem, size = 0x9000, scoped, tag = 'internal scratch']
  %s0 = inlined_call_operand.hbm [shape: f32[16,128], index: 0, kind: input, shape index: {}]
  %s1 = inlined_call_operand.hbm [shape: f32[16,128], index: 1, kind: input, shape index: {}]
  %s2 = inlined_call_operand.hbm [shape: f32[1,128], index: 2, kind: output, shape index: {}]
  %s3 = sld [smem:[#allocation0]]
  $region26: #{tpu_custom_call.1} parent=0
    _
  %s5 = ssub.s32 1, %s3
  %s6 = scalar_select 0, %s5, %s3
  $region1: #{tpu_custom_call.1} parent=0
    #allocation2 [shape = 'u8[8192]{0}', space=vmem, size = 0x2000, scoped, tag = 'input window, operand 0, single buffered']
    #allocation3 [shape = 's32[1]{0}', space=sflag, size = 0x4, scoped, tag = 'scoped memory for tpu_custom_call.1']
    #allocation4 [shape = 's32[1]{0}', space=sflag, size = 0x4, scoped, tag = 'scoped memory for tpu_custom_call.1']
    #allocation5 [shape = 'u8[8192]{0}', space=vmem, size = 0x2000, scoped, tag = 'input window, operand 1, single buffered']
    #allocation6 [shape = 's32[1]{0}', space=sflag, size = 0x4, scoped, tag = 'scoped memory for tpu_custom_call.1']
    #allocation7 [shape = 'u8[512]{0}', space=vmem, size = 0x400, scoped, tag = 'output window, operand 0, single buffered']
    %7 = vsyncpa [#allocation3], 0
    %8 = vsyncpa [#allocation6], 0
    %9 = vsyncpa [#allocation4], 0
    // Predicated region
    $region2: #{tpu_custom_call.1} parent=1 // pred_check
      _
    $region3: #{tpu_custom_call.1} parent=1 // pred_check_branch
      %11 = sbr.rel (0) target = $region5
    $region4: #{tpu_custom_call.1} parent=1 // pred_region
      %13 = vsyncadd [#allocation3], 0
      %s14 = sshll.u32 %s0, 4
      %s15 = int_to_ptr.hbm [resolvable:$true] %s14
      %s16 = sshll.u32 [#allocation2], 4
      %s17 = int_to_ptr.vmem [resolvable:$true] %s16
      %22 = dma.hbm_to_vmem [thread:$0]  %s15, 256, %s17, [#allocation3], 128, 128, 8
    $region5: #{tpu_custom_call.1} parent=1 // pred_fallthru
      _
    // Predicated region
    $region6: #{tpu_custom_call.1} parent=1 // pred_check
      _
    $region7: #{tpu_custom_call.1} parent=1 // pred_check_branch
      %24 = sbr.rel (0) target = $region9
    $region8: #{tpu_custom_call.1} parent=1 // pred_region
      %26 = vsyncadd [#allocation6], 0
      %s27 = sshll.u32 %s1, 4
      %s28 = int_to_ptr.hbm [resolvable:$true] %s27
      %s29 = sshll.u32 [#allocation5], 4
      %s30 = int_to_ptr.vmem [resolvable:$true] %s29
      %35 = dma.hbm_to_vmem [thread:$0]  %s28, 256, %s30, [#allocation6], 128, 128, 8
    $region9: #{tpu_custom_call.1} parent=1 // pred_fallthru
      _
    // Predicated region
    $region10: #{tpu_custom_call.1} parent=1 // pred_check
      _
    $region11: #{tpu_custom_call.1} parent=1 // pred_check_branch
      %37 = sbr.rel (0) target = $region13
    $region12: #{tpu_custom_call.1} parent=1 // pred_region
      %39 = dma.done [#allocation3], 256
    $region13: #{tpu_custom_call.1} parent=1 // pred_fallthru
      _
    // Predicated region
    $region14: #{tpu_custom_call.1} parent=1 // pred_check
      _
    $region15: #{tpu_custom_call.1} parent=1 // pred_check_branch
      %41 = sbr.rel (0) target = $region17
    $region16: #{tpu_custom_call.1} parent=1 // pred_region
      %43 = dma.done [#allocation6], 256
    $region17: #{tpu_custom_call.1} parent=1 // pred_fallthru
      _
    %v44 = vld [vmem:[#allocation2] sm:$0xff]
    %v45 = vld [vmem:[#allocation2 + $0x8] sm:$0xff]
    %v46 = vld [vmem:[#allocation5] sm:$0xff]
    %v47 = vld [vmem:[#allocation5 + $0x8] sm:$0xff]
    %v48 = vlaneseq
    %v49 = vshrl.u32 %v48, 7
    %v50 = vadd.s32 %v49, 8
    %s51 = smul.u32 0, 16
    %v52 = vstv %s51
    %v53 = vadd.s32 %v49, %v52
    %v54 = vadd.s32 %v50, %v52
    %vm55 = vcmp.lt.s32.totalorder %v53, 16
    %vm56 = vcmp.lt.s32.totalorder %v54, 16
    %vm57 = vcmp.gt.f32.partialorder %v46, 0.0
    %vm58 = vcmp.gt.f32.partialorder %v47, 0.0
    %vm59 = vmand %vm55, %vm57
    %vm60 = vmand %vm56, %vm58
    %v61 = vsub.f32 %v44, %v46
    %v62 = vsub.f32 %v45, %v47
    %v63 = vsel %vm59, %v61, 0.0
    %v64 = vsel %vm60, %v62, 0.0
    %v65 = vand.u32 2147483647, %v63
    %v66 = vand.u32 2147483647, %v64
    %vm67 = vcmp.lt.f32.partialorder %v65, 1.0
    %vm68 = vcmp.lt.f32.partialorder %v66, 1.0
    %v69 = vmul.f32 %v63, 0.5
    %v70 = vmul.f32 %v64, 0.5
    %v71 = vmul.f32 %v69, %v63
    %v72 = vmul.f32 %v70, %v64
    %v73 = vsub.f32 %v65, 0.5
    %v74 = vsub.f32 %v66, 0.5
    %v75 = vsel %vm67, %v71, %v73
    %v76 = vsel %vm68, %v72, %v74
    %v77 = vadd.f32 %v75, %v76
    %v78 = vrot.slane %v77, 4
    %v79 = vadd.f32 %v77, %v78
    %v80 = vrot.slane %v79, 2
    %v81 = vadd.f32 %v79, %v80
    %v82 = vrot.slane %v81, 1
    %v83 = vadd.f32 %v81, %v82
    %84 = vst [vmem:[#allocation7] sm:$0x1] %v83
    // Predicated region
    $region18: #{tpu_custom_call.1} parent=1 // pred_check
      _
    $region19: #{tpu_custom_call.1} parent=1 // pred_check_branch
      %86 = sbr.rel (0) target = $region21
    $region20: #{tpu_custom_call.1} parent=1 // pred_region
      %88 = vsyncadd [#allocation4], 0
      %s90 = sshll.u32 [#allocation7], 4
      %s91 = int_to_ptr.vmem [resolvable:$true] %s90
      %s92 = sshll.u32 %s2, 4
      %s93 = int_to_ptr.hbm [resolvable:$true] %s92
      %95 = dma.vmem_to_hbm [thread:$0]  %s91, 16, %s93, [#allocation4]
    $region21: #{tpu_custom_call.1} parent=1 // pred_fallthru
      _
    // Predicated region
    $region22: #{tpu_custom_call.1} parent=1 // pred_check
      _
    $region23: #{tpu_custom_call.1} parent=1 // pred_check_branch
      %97 = sbr.rel (0) target = $region25
    $region24: #{tpu_custom_call.1} parent=1 // pred_region
      %99 = dma.done [#allocation4], 16
    $region25: #{tpu_custom_call.1} parent=1 // pred_fallthru
      _
    %100 = vsyncpa [#allocation3], 1
    %101 = vsyncpa [#allocation6], 1
    %102 = vsyncpa [#allocation4], 1

</llo_original>
